<compile_context>
chip_gen: v6e
topology: v6e:2x2x1
jax: 0.10.0
libtpu: 0.0.40
codegen_flags: <defaults>
</compile_context>

<pallas_src>
import math
from functools import partial

import jax
import jax.numpy as jnp
from jax import lax
from jax.experimental import pallas as pl
from jax.experimental.pallas import tpu as pltpu

EPS = 1e-5
LANE = 128


def _largest_tile(n_pad, cap):
    """Largest multiple of 128 <= cap that divides n_pad (n_pad % 128 == 0)."""
    t = min(cap, n_pad)
    t -= t % LANE
    while n_pad % t:
        t -= LANE
    return t


def _gcn_kernel(x_ref, w_ref, y_ref, psum_ref, psumsq_ref, xb_ref, sup_ref, *,
                n_real):
    """Query-tiled GCN hot path.

    Grid: (B, NQ) with the node/query tile axis inner ("arbitrary").
    x_ref   : (1, C, Np) f32   full node range for this batch (Np = padded N)
    w_ref   : (C, C)     bf16  pre-cast weight
    y_ref   : (1, C, TQ) bf16  relu(support @ adj) for this query tile
    psum_ref / psumsq_ref : (1, C, 1) f32 per-channel partial sums (accumulated
                            across query tiles; resident across the qi axis)
    xb_ref  : (C, Np) bf16 scratch -- x cast once per batch
    sup_ref : (C, Np) bf16 scratch -- support = W @ x computed once per batch
    """
    qi = pl.program_id(1)
    _, n_pad = xb_ref.shape
    tq = y_ref.shape[-1]

    @pl.when(qi == 0)
    def _():
        xb = x_ref[0].astype(jnp.bfloat16)                       # (C, Np)
        xb_ref[...] = xb
        sup_ref[...] = jnp.dot(w_ref[...], xb,
                               preferred_element_type=jnp.float32
                               ).astype(jnp.bfloat16)            # (C, Np)
        psum_ref[...] = jnp.zeros_like(psum_ref)
        psumsq_ref[...] = jnp.zeros_like(psumsq_ref)

    # Query tile of x (lane-aligned slice of the bf16 scratch).
    j0 = pl.multiple_of(qi * tq, LANE)
    xq = xb_ref[:, pl.ds(j0, tq)]                                # (C, TQ) bf16

    # logits[jl, i] = sum_c x[c, j0+jl] * x[c, i]   (bf16 MXU, f32 accumulate;
    # contract dim 0 of both -> no materialized transpose).
    logits = lax.dot_general(xq, xb_ref[...], (((0,), (0,)), ((), ())),
                             preferred_element_type=jnp.float32)  # (TQ, Np)

    # Mask padded key columns with a single (1, Np) additive bias row.
    if n_real != n_pad:
        key_ids = lax.broadcasted_iota(jnp.int32, (1, n_pad), 1)
        logits = logits + jnp.where(key_ids < n_real, 0.0, jnp.float32(-1e30))

    # Lane-axis softmax over keys.  L is symmetric (same bf16 x on both sides),
    # so softmax(L[j, :]) == adj[:, j] of the PyTorch dim=1 softmax.
    m = jnp.max(logits, axis=-1, keepdims=True)
    e = jnp.exp(logits - m)
    s = jnp.sum(e, axis=-1, keepdims=True)
    p = (e * pl.reciprocal(s, approx=True)).astype(jnp.bfloat16)  # (TQ, Np)

    # out[c, j] = sum_i support[c, i] * adj[i, j]  (contract last dims).
    out = lax.dot_general(sup_ref[...], p, (((1,), (1,)), ((), ())),
                          preferred_element_type=jnp.float32)     # (C, TQ)
    out = jnp.maximum(out, 0.0)                                   # ReLU

    # Zero padded query/node columns so BN statistics only see real nodes.
    if n_real != n_pad:
        col_ids = lax.broadcasted_iota(jnp.int32, (1, tq), 1) + j0
        out = out * (col_ids < n_real).astype(jnp.float32)

    y_ref[0] = out.astype(jnp.bfloat16)
    psum_ref[0] = psum_ref[0] + jnp.sum(out, axis=-1, keepdims=True)
    psumsq_ref[0] = psumsq_ref[0] + jnp.sum(out * out, axis=-1, keepdims=True)


def _bn_kernel(y_ref, scale_ref, shift_ref, o_ref):
    """BatchNorm1d apply: pure fused multiply-add with precomputed scale/shift."""
    o_ref[0] = y_ref[0].astype(jnp.float32) * scale_ref[...] + shift_ref[...]


def graph_convolution_forward(x, weight, bn_gamma, bn_beta):
    B, C, N = x.shape
    n_pad = pl.cdiv(N, LANE) * LANE
    if n_pad != N:
        # lane-dense layout: pad nodes to a multiple of 128 (masked in-kernel)
        x = jnp.pad(x, ((0, 0), (0, 0), (0, n_pad - N)))

    tq = _largest_tile(n_pad, 512)       # query/node tile for pass 1
    nq = n_pad // tq
    w_bf = weight.astype(jnp.bfloat16)   # pre-cast once in the wrapper

    # scoped-VMEM budget from the actual live set (double-buffered I/O blocks,
    # bf16 scratches, f32 logits/exp tile); clamp under the v7x 64 MiB cap.
    vmem_est = int(
        2 * C * n_pad * 4            # x block (f32), double-buffered
        + 2 * C * C * 2              # weight block (bf16), double-buffered
        + 2 * C * tq * 2             # y block (bf16), double-buffered
        + 4 * C * LANE * 4           # psum/psumsq blocks (lane-padded)
        + 2 * C * n_pad * 2          # x_bf16 + support scratches (bf16)
        + tq * n_pad * (4 + 4 + 2)   # logits (f32) + e (f32) + p (bf16)
        + 4 * C * tq * 4)            # out / misc f32 temps
    vmem_limit = min(max(2 * vmem_est, 32 * 1024 * 1024), 60 * 1024 * 1024)

    cost1 = pl.CostEstimate(
        flops=int(2 * B * (2 * C * n_pad * n_pad + C * C * n_pad)),
        transcendentals=int(B * n_pad * n_pad),
        bytes_accessed=int(4 * B * C * n_pad + 2 * C * C
                           + 2 * B * C * n_pad + 8 * B * C))

    # Pass 1: per-(batch, query-tile) GCN + BN partial sums.
    y, psum, psumsq = pl.pallas_call(
        partial(_gcn_kernel, n_real=N),
        out_shape=(jax.ShapeDtypeStruct((B, C, n_pad), jnp.bfloat16),
                   jax.ShapeDtypeStruct((B, C, 1), jnp.float32),
                   jax.ShapeDtypeStruct((B, C, 1), jnp.float32)),
        grid_spec=pltpu.PrefetchScalarGridSpec(
            num_scalar_prefetch=0,
            grid=(B, nq),
            in_specs=[
                pl.BlockSpec((1, C, n_pad), lambda b, q: (b, 0, 0)),
                pl.BlockSpec((C, C), lambda b, q: (0, 0)),
            ],
            out_specs=[
                pl.BlockSpec((1, C, tq), lambda b, q: (b, 0, q)),
                pl.BlockSpec((1, C, 1), lambda b, q: (b, 0, 0)),
                pl.BlockSpec((1, C, 1), lambda b, q: (b, 0, 0)),
            ],
            scratch_shapes=[pltpu.VMEM((C, n_pad), jnp.bfloat16),
                            pltpu.VMEM((C, n_pad), jnp.bfloat16)]),
        compiler_params=pltpu.CompilerParams(
            # qi must be "arbitrary": psum/support scratch are resident across it.
            # TODO(synk): for B == 1 on v7x, switch to per-tile partials +
            # stateless support recompute so the qi axis can be "parallel".
            dimension_semantics=("parallel", "arbitrary"),
            vmem_limit_bytes=vmem_limit),
        cost_estimate=cost1,
    )(x, w_bf)

    # BN finalize hoisted to plain JAX: tiny (C, 1) scale/shift, computed once.
    count = float(B * N)
    mean = jnp.sum(psum, axis=0) / count                  # (C, 1)
    ex2 = jnp.sum(psumsq, axis=0) / count                 # (C, 1)
    var = jnp.maximum(ex2 - mean * mean, 0.0)             # biased variance
    scale = bn_gamma * lax.rsqrt(var + EPS)               # (C, 1)
    shift = bn_beta - mean * scale                        # (C, 1)

    tn = _largest_tile(n_pad, 1024)
    nt = n_pad // tn
    cost2 = pl.CostEstimate(
        flops=int(2 * B * C * n_pad),
        transcendentals=0,
        bytes_accessed=int(2 * B * C * n_pad + 4 * B * C * n_pad + 8 * C))

    # Pass 2: lane-dense, mem-bound BN apply (bf16 read, f32 write).
    out = pl.pallas_call(
        _bn_kernel,
        out_shape=jax.ShapeDtypeStruct((B, C, n_pad), jnp.float32),
        grid_spec=pltpu.PrefetchScalarGridSpec(
            num_scalar_prefetch=0,
            grid=(B, nt),
            in_specs=[
                pl.BlockSpec((1, C, tn), lambda b, t: (b, 0, t)),
                pl.BlockSpec((C, 1), lambda b, t: (0, 0)),
                pl.BlockSpec((C, 1), lambda b, t: (0, 0)),
            ],
            out_specs=pl.BlockSpec((1, C, tn), lambda b, t: (b, 0, t))),
        compiler_params=pltpu.CompilerParams(
            dimension_semantics=("parallel", "parallel")),
        cost_estimate=cost2,
    )(y, scale, shift)

    return out[:, :, :N] if n_pad != N else out


def reference_forward(x, weight, gamma, beta):
    """Pure-JAX f32 reference mirroring the PyTorch forward (training-mode BN)."""
    adj = jnp.einsum("bci,bcj->bij", x, x)                  # (B, N, N)
    adj = jax.nn.softmax(adj, axis=1)
    support = jnp.einsum("ck,bkn->bcn", weight, x)          # (B, C, N)
    out = jnp.einsum("bci,bij->bcj", support, adj)          # (B, C, N)
    out = jnp.maximum(out, 0.0)
    mean = jnp.mean(out, axis=(0, 2), keepdims=True)
    var = jnp.mean((out - mean) ** 2, axis=(0, 2), keepdims=True)
    g = gamma.reshape(1, -1, 1)
    b = beta.reshape(1, -1, 1)
    return (out - mean) * lax.rsqrt(var + EPS) * g + b


if __name__ == "__main__":
    # Small shapes consistent with the module: in_features = out_features = C.
    # N=64 deliberately exercises the lane-padding (64 -> 128) + masking path.
    B, C, N = 2, 32, 64

    key = jax.random.PRNGKey(0)
    kx, kw, kg, kb = jax.random.split(key, 4)

    x = jax.random.normal(kx, (B, C, N), dtype=jnp.float32)

    # reset_parameters(): weight ~ U(-stdv, stdv), stdv = 1/sqrt(out_features)
    stdv = 1.0 / math.sqrt(C)
    weight = jax.random.uniform(kw, (C, C), jnp.float32, -stdv, stdv)

    # bn gamma/beta: deterministic non-zero (PyTorch init sets them to 0, which
    # would make the output identically zero -- see NOTE above).
    bn_gamma = jax.random.uniform(kg, (C, 1), jnp.float32, 0.5, 1.5)
    bn_beta = jax.random.uniform(kb, (C, 1), jnp.float32, -0.5, 0.5)

    out = graph_convolution_forward(x, weight, bn_gamma, bn_beta)
    out = jax.block_until_ready(out)

    ref = reference_forward(x, weight, bn_gamma, bn_beta)
    assert out.shape == (B, C, N)
    # bf16 adjacency logits + bf16 MXU matmuls + bf16 y + approx reciprocal ->
    # compare against the f32 reference with a loosened tolerance (values
    # post-BN are O(1)).
    err = float(jnp.max(jnp.abs(out - ref)))
    assert jnp.allclose(out, ref, atol=5e-2, rtol=5e-2), f"max abs err {err}"

    # TODO(synk): BatchNorm1d running_mean/running_var momentum updates (inference
    # buffers) are not modeled; only training-mode batch statistics are computed.
    print("KERNEL_OK")
</pallas_src>

<mosaic_0001>
module attributes {stable_mosaic.version = 11 : i64} {
  func.func @_gcn_kernel(%arg0: i32, %arg1: i32, %arg2: memref<1x32x128xf32, #tpu.memory_space<vmem>>, %arg3: memref<32x32xbf16, #tpu.memory_space<vmem>>, %arg4: memref<1x32x128xbf16, #tpu.memory_space<vmem>>, %arg5: memref<1x32x1xf32, #tpu.memory_space<vmem>>, %arg6: memref<1x32x1xf32, #tpu.memory_space<vmem>>, %arg7: memref<32x128xbf16, #tpu.memory_space<vmem>>, %arg8: memref<32x128xbf16, #tpu.memory_space<vmem>>) attributes {dimension_semantics = [#tpu.dimension_semantics<parallel>, #tpu.dimension_semantics<arbitrary>], iteration_bounds = array<i64: 2, 1>, scalar_prefetch = 0 : i64, scratch_operands = 2 : i64, tpu.core_type = #tpu.core_type<tc>, window_params = [{transform_indices = @transform_0, window_bounds = array<i64: 1, 32, 128>}, {pipeline_mode = #tpu.pipeline_mode<synchronous>, transform_indices = @transform_1, window_bounds = array<i64: 32, 32>}, {transform_indices = @transform_2, window_bounds = array<i64: 1, 32, 128>}, {transform_indices = @transform_3, window_bounds = array<i64: 1, 32, 1>}, {transform_indices = @transform_4, window_bounds = array<i64: 1, 32, 1>}]} {
    %c0_i32 = arith.constant 0 : i32
    %0 = arith.cmpi eq, %arg1, %c0_i32 : i32
    %1 = arith.extui %0 : i1 to i32
    %c0_i32_0 = arith.constant 0 : i32
    %2 = arith.cmpi ne, %1, %c0_i32_0 : i32
    scf.if %2 {
      %c0_29 = arith.constant 0 : index
      %c0_30 = arith.constant 0 : index
      %c0_31 = arith.constant 0 : index
      %62 = vector.load %arg2[%c0_29, %c0_30, %c0_31] : memref<1x32x128xf32, #tpu.memory_space<vmem>>, vector<1x32x128xf32>
      %63 = vector.shape_cast %62 : vector<1x32x128xf32> to vector<32x128xf32>
      %64 = arith.truncf %63 : vector<32x128xf32> to vector<32x128xbf16>
      %c0_32 = arith.constant 0 : index
      %c0_33 = arith.constant 0 : index
      %65 = vector.load %arg7[%c0_32, %c0_33] : memref<32x128xbf16, #tpu.memory_space<vmem>>, vector<32x128xbf16>
      tpu.vector_store %arg7[%c0_32, %c0_33], %64 {strides = array<i32>} : memref<32x128xbf16, #tpu.memory_space<vmem>>, vector<32x128xbf16>,
      %c0_34 = arith.constant 0 : index
      %c0_35 = arith.constant 0 : index
      %66 = vector.load %arg3[%c0_34, %c0_35] : memref<32x32xbf16, #tpu.memory_space<vmem>>, vector<32x32xbf16>
      %cst_36 = arith.constant dense<0.000000e+00> : vector<32x128xf32>
      %67 = tpu.matmul %66, %64, %cst_36 {dimension_numbers = #tpu.dot_dimension_numbers<[1], [0], [0], [1], [0, 0, 1, 1], [], []>} : vector<32x32xbf16>, vector<32x128xbf16>, vector<32x128xf32> -> vector<32x128xf32>
      %68 = arith.truncf %67 : vector<32x128xf32> to vector<32x128xbf16>
      %c0_37 = arith.constant 0 : index
      %c0_38 = arith.constant 0 : index
      %69 = vector.load %arg8[%c0_37, %c0_38] : memref<32x128xbf16, #tpu.memory_space<vmem>>, vector<32x128xbf16>
      tpu.vector_store %arg8[%c0_37, %c0_38], %68 {strides = array<i32>} : memref<32x128xbf16, #tpu.memory_space<vmem>>, vector<32x128xbf16>,
      %cst_39 = arith.constant 0.000000e+00 : f32
      %70 = vector.broadcast %cst_39 : f32 to vector<1x32x1xf32>
      %c0_40 = arith.constant 0 : index
      %c0_41 = arith.constant 0 : index
      %c0_42 = arith.constant 0 : index
      %71 = vector.load %arg5[%c0_40, %c0_41, %c0_42] : memref<1x32x1xf32, #tpu.memory_space<vmem>>, vector<1x32x1xf32>
      tpu.vector_store %arg5[%c0_40, %c0_41, %c0_42], %70 {strides = array<i32>} : memref<1x32x1xf32, #tpu.memory_space<vmem>>, vector<1x32x1xf32>,
      %cst_43 = arith.constant 0.000000e+00 : f32
      %72 = vector.broadcast %cst_43 : f32 to vector<1x32x1xf32>
      %c0_44 = arith.constant 0 : index
      %c0_45 = arith.constant 0 : index
      %c0_46 = arith.constant 0 : index
      %73 = vector.load %arg6[%c0_44, %c0_45, %c0_46] : memref<1x32x1xf32, #tpu.memory_space<vmem>>, vector<1x32x1xf32>
      tpu.vector_store %arg6[%c0_44, %c0_45, %c0_46], %72 {strides = array<i32>} : memref<1x32x1xf32, #tpu.memory_space<vmem>>, vector<1x32x1xf32>,
    } else {
    }
    %c128_i32 = arith.constant 128 : i32
    %3 = arith.muli %arg1, %c128_i32 : i32
    %4 = tpu.assume_multiple %3, 128 : i32
    %c0 = arith.constant 0 : index
    %5 = arith.index_cast %4 : i32 to index
    %6 = vector.load %arg7[%c0, %5] : memref<32x128xbf16, #tpu.memory_space<vmem>>, vector<32x128xbf16>
    %c0_1 = arith.constant 0 : index
    %c0_2 = arith.constant 0 : index
    %7 = vector.load %arg7[%c0_1, %c0_2] : memref<32x128xbf16, #tpu.memory_space<vmem>>, vector<32x128xbf16>
    %cst = arith.constant dense<0.000000e+00> : vector<128x128xf32>
    %8 = tpu.matmul %6, %7, %cst {dimension_numbers = #tpu.dot_dimension_numbers<[0], [0], [1], [1], [0, 1, 1, 1], [], []>} : vector<32x128xbf16>, vector<32x128xbf16>, vector<128x128xf32> -> vector<128x128xf32>
    %9 = tpu.iota {dimensions = array<i32: 1>} : vector<1x128xi32>
    %c64_i32 = arith.constant 64 : i32
    %10 = vector.broadcast %c64_i32 : i32 to vector<1x128xi32>
    %11 = arith.cmpi slt, %9, %10 : vector<1x128xi32>
    %cst_3 = arith.constant 0.000000e+00 : f32
    %cst_4 = arith.constant -1.000000e+30 : f32
    %12 = vector.broadcast %cst_3 : f32 to vector<1x128xf32>
    %13 = vector.broadcast %cst_4 : f32 to vector<1x128xf32>
    %14 = arith.select %11, %12, %13 : vector<1x128xi1>, vector<1x128xf32>
    %15 = vector.broadcast %14 : vector<1x128xf32> to vector<128x128xf32>
    %16 = arith.addf %8, %15 : vector<128x128xf32>
    %cst_5 = arith.constant dense<0xFF800000> : vector<128xf32>
    %17 = vector.multi_reduction <maximumf>, %16, %cst_5 [1] : vector<128x128xf32> to vector<128xf32>
    %18 = vector.shape_cast %17 : vector<128xf32> to vector<128x1xf32>
    %19 = vector.broadcast %18 : vector<128x1xf32> to vector<128x128xf32>
    %20 = arith.subf %16, %19 : vector<128x128xf32>
    %21 = math.exp %20 : vector<128x128xf32>
    %cst_6 = arith.constant dense<0.000000e+00> : vector<128xf32>
    %22 = vector.multi_reduction <add>, %21, %cst_6 [1] : vector<128x128xf32> to vector<128xf32>
    %23 = vector.shape_cast %22 : vector<128xf32> to vector<128x1xf32>
    %24 = tpu.reciprocal %23 {approx = true} : vector<128x1xf32> -> vector<128x1xf32>
    %25 = vector.broadcast %24 : vector<128x1xf32> to vector<128x128xf32>
    %26 = arith.mulf %21, %25 : vector<128x128xf32>
    %27 = arith.truncf %26 : vector<128x128xf32> to vector<128x128xbf16>
    %c0_7 = arith.constant 0 : index
    %c0_8 = arith.constant 0 : index
    %28 = vector.load %arg8[%c0_7, %c0_8] : memref<32x128xbf16, #tpu.memory_space<vmem>>, vector<32x128xbf16>
    %cst_9 = arith.constant dense<0.000000e+00> : vector<32x128xf32>
    %29 = tpu.matmul %28, %27, %cst_9 {dimension_numbers = #tpu.dot_dimension_numbers<[1], [1], [0], [0], [0, 0, 1, 0], [], []>} : vector<32x128xbf16>, vector<128x128xbf16>, vector<32x128xf32> -> vector<32x128xf32>
    %cst_10 = arith.constant 0.000000e+00 : f32
    %30 = vector.broadcast %cst_10 : f32 to vector<32x128xf32>
    %31 = arith.maximumf %29, %30 : vector<32x128xf32>
    %32 = tpu.iota {dimensions = array<i32: 1>} : vector<1x128xi32>
    %33 = vector.broadcast %4 : i32 to vector<1x128xi32>
    %34 = arith.addi %32, %33 : vector<1x128xi32>
    %c64_i32_11 = arith.constant 64 : i32
    %35 = vector.broadcast %c64_i32_11 : i32 to vector<1x128xi32>
    %36 = arith.cmpi slt, %34, %35 : vector<1x128xi32>
    %37 = arith.extui %36 : vector<1x128xi1> to vector<1x128xi32>
    %38 = arith.sitofp %37 : vector<1x128xi32> to vector<1x128xf32>
    %39 = vector.broadcast %38 : vector<1x128xf32> to vector<32x128xf32>
    %40 = arith.mulf %31, %39 : vector<32x128xf32>
    %41 = arith.truncf %40 : vector<32x128xf32> to vector<32x128xbf16>
    %c0_12 = arith.constant 0 : index
    %c0_13 = arith.constant 0 : index
    %c0_14 = arith.constant 0 : index
    %42 = vector.load %arg4[%c0_12, %c0_13, %c0_14] : memref<1x32x128xbf16, #tpu.memory_space<vmem>>, vector<1x32x128xbf16>
    %43 = vector.shape_cast %42 : vector<1x32x128xbf16> to vector<32x128xbf16>
    %44 = vector.shape_cast %41 : vector<32x128xbf16> to vector<1x32x128xbf16>
    tpu.vector_store %arg4[%c0_12, %c0_13, %c0_14], %44 {strides = array<i32>} : memref<1x32x128xbf16, #tpu.memory_space<vmem>>, vector<1x32x128xbf16>,
    %c0_15 = arith.constant 0 : index
    %c0_16 = arith.constant 0 : index
    %c0_17 = arith.constant 0 : index
    %45 = vector.load %arg5[%c0_15, %c0_16, %c0_17] : memref<1x32x1xf32, #tpu.memory_space<vmem>>, vector<1x32x1xf32>
    %46 = vector.shape_cast %45 : vector<1x32x1xf32> to vector<32x1xf32>
    %cst_18 = arith.constant dense<0.000000e+00> : vector<32xf32>
    %47 = vector.multi_reduction <add>, %40, %cst_18 [1] : vector<32x128xf32> to vector<32xf32>
    %48 = vector.shape_cast %47 : vector<32xf32> to vector<32x1xf32>
    %49 = arith.addf %46, %48 : vector<32x1xf32>
    %c0_19 = arith.constant 0 : index
    %c0_20 = arith.constant 0 : index
    %c0_21 = arith.constant 0 : index
    %50 = vector.load %arg5[%c0_19, %c0_20, %c0_21] : memref<1x32x1xf32, #tpu.memory_space<vmem>>, vector<1x32x1xf32>
    %51 = vector.shape_cast %50 : vector<1x32x1xf32> to vector<32x1xf32>
    %52 = vector.shape_cast %49 : vector<32x1xf32> to vector<1x32x1xf32>
    tpu.vector_store %arg5[%c0_19, %c0_20, %c0_21], %52 {strides = array<i32>} : memref<1x32x1xf32, #tpu.memory_space<vmem>>, vector<1x32x1xf32>,
    %c0_22 = arith.constant 0 : index
    %c0_23 = arith.constant 0 : index
    %c0_24 = arith.constant 0 : index
    %53 = vector.load %arg6[%c0_22, %c0_23, %c0_24] : memref<1x32x1xf32, #tpu.memory_space<vmem>>, vector<1x32x1xf32>
    %54 = vector.shape_cast %53 : vector<1x32x1xf32> to vector<32x1xf32>
    %55 = arith.mulf %40, %40 : vector<32x128xf32>
    %cst_25 = arith.constant dense<0.000000e+00> : vector<32xf32>
    %56 = vector.multi_reduction <add>, %55, %cst_25 [1] : vector<32x128xf32> to vector<32xf32>
    %57 = vector.shape_cast %56 : vector<32xf32> to vector<32x1xf32>
    %58 = arith.addf %54, %57 : vector<32x1xf32>
    %c0_26 = arith.constant 0 : index
    %c0_27 = arith.constant 0 : index
    %c0_28 = arith.constant 0 : index
    %59 = vector.load %arg6[%c0_26, %c0_27, %c0_28] : memref<1x32x1xf32, #tpu.memory_space<vmem>>, vector<1x32x1xf32>
    %60 = vector.shape_cast %59 : vector<1x32x1xf32> to vector<32x1xf32>
    %61 = vector.shape_cast %58 : vector<32x1xf32> to vector<1x32x1xf32>
    tpu.vector_store %arg6[%c0_26, %c0_27, %c0_28], %61 {strides = array<i32>} : memref<1x32x1xf32, #tpu.memory_space<vmem>>, vector<1x32x1xf32>,
    return
  }
  func.func @transform_0(%arg0: i32, %arg1: i32) -> (i32, i32, i32) {
    %c0_i32 = arith.constant 0 : i32
    %c0_i32_0 = arith.constant 0 : i32
    %c0_i32_1 = arith.constant 0 : i32
    return %arg0, %c0_i32, %c0_i32_0 : i32, i32, i32
  }
  func.func @transform_1(%arg0: i32, %arg1: i32) -> (i32, i32) {
    %c0_i32 = arith.constant 0 : i32
    %c0_i32_0 = arith.constant 0 : i32
    %c0_i32_1 = arith.constant 0 : i32
    return %c0_i32, %c0_i32_0 : i32, i32
  }
  func.func @transform_2(%arg0: i32, %arg1: i32) -> (i32, i32, i32) {
    %c0_i32 = arith.constant 0 : i32
    %c0_i32_0 = arith.constant 0 : i32
    return %arg0, %c0_i32, %arg1 : i32, i32, i32
  }
  func.func @transform_3(%arg0: i32, %arg1: i32) -> (i32, i32, i32) {
    %c0_i32 = arith.constant 0 : i32
    %c0_i32_0 = arith.constant 0 : i32
    %c0_i32_1 = arith.constant 0 : i32
    return %arg0, %c0_i32, %c0_i32_0 : i32, i32, i32
  }
  func.func @transform_4(%arg0: i32, %arg1: i32) -> (i32, i32, i32) {
    %c0_i32 = arith.constant 0 : i32
    %c0_i32_0 = arith.constant 0 : i32
    %c0_i32_1 = arith.constant 0 : i32
    return %arg0, %c0_i32, %c0_i32_0 : i32, i32, i32
  }
}

</mosaic_0001>

<llo_original>
// kernel: tpu_custom_call.1
$region0: #{tpu_custom_call.1}
  #allocation0 [shape = 'u32[]', space=smem, size = 0x4, offset = 0x4, fixed_abs, tag = 'smem constant byte address 0x4 - core index']
  #allocation1 [shape = 'u32[144,128]{1,0:T(1,128)}', space=vmem, size = 0x12000, scoped, tag = 'internal scratch']
  #allocation2 [shape = 'bf16[32,128]{1,0:T(8,128)(2,1)}', space=vmem, size = 0x2000, scoped, tag = 'scratch operand']
  #allocation3 [shape = 'bf16[32,128]{1,0:T(8,128)(2,1)}', space=vmem, size = 0x2000, scoped, tag = 'scratch operand']
  %s0 = inlined_call_operand.hbm [shape: f32[2,32,128], index: 0, kind: input, shape index: {}]
  %s1 = inlined_call_operand.hbm [shape: bf16[32,32], index: 1, kind: input, shape index: {}]
  %s2 = inlined_call_operand.hbm [shape: bf16[2,32,128], index: 2, kind: output, shape index: {0}]
  %s3 = inlined_call_operand.vmem [shape: f32[2,32,1], index: 3, kind: output, shape index: {1}]
  %s4 = inlined_call_operand.vmem [shape: f32[2,32,1], index: 4, kind: output, shape index: {2}]
  %5 = xla_tuple %s2, %s3, %s4
  %s6 = sld [smem:[#allocation0]]
  $region69: #{tpu_custom_call.1} parent=0
    _
  %s8 = ssub.s32 1, %s6
  %s9 = scalar_select 0, %s8, %s6
  $region1: #{tpu_custom_call.1} parent=0
    #allocation4 [shape = 'u8[32768]{0}', space=vmem, size = 0x8000, scoped, tag = 'input window, operand 0']
    #allocation5 [shape = 's32[2]{0}', space=sflag, size = 0x8, scoped, tag = 'scoped memory for tpu_custom_call.1']
    #allocation6 [shape = 's32[2]{0}', space=sflag, size = 0x8, scoped, tag = 'scoped memory for tpu_custom_call.1']
    #allocation7 [shape = 'u8[8192]{0}', space=vmem, size = 0x2000, scoped, tag = 'input window, operand 1, single buffered']
    #allocation8 [shape = 's32[1]{0}', space=sflag, size = 0x4, scoped, tag = 'scoped memory for tpu_custom_call.1']
    #allocation9 [shape = 'u8[16384]{0}', space=vmem, size = 0x4000, scoped, tag = 'output window, operand 0']
    %10 = vsyncpa [#allocation5], 0
    %s11 = scalar_lea.sflag [#allocation5], 1
    %12 = vsyncpa %s11, 0
    %13 = vsyncpa [#allocation8], 0
    %14 = vsyncpa [#allocation6], 0
    %s15 = scalar_lea.sflag [#allocation6], 1
    %16 = vsyncpa %s15, 0
    loop: start=0, step=1, limit=4
    $region2: #{tpu_custom_call.1} parent=1 // loop_pre_header
      _
    $region3: #{tpu_custom_call.1} parent=1 // loop_header
      %s18 = sphi 0, %s22
      %p19 = scmp.ge.s32.totalorder %s18, 4
      %s25 = sphi 0, %s37
      %s26 = sphi 0, %s33
      %s27 = sphi 0, %s25
      %s28 = sphi 0, %s26
      %s29 = sphi 0, %s27
      %s30 = sphi 0, %s28
      %s40 = sphi 0, %s42
      %s43 = sphi 0, %s40
      %s44 = sphi 0, %s43
      %s60 = sphi 0, %s44
      %s64 = sphi 0, %s64
      %s66 = sphi 0, %s64
      %s67 = sphi 0, %s66
      %s81 = sphi 0, %s67
      %s89 = sphi 0, %s91
      %s92 = sphi 0, %s89
      %s93 = sphi 0, %s92
      %s109 = sphi 0, %s93
      %s115 = sphi 0, %s117
      %s118 = sphi 0, %s115
      %s119 = sphi 0, %s118
      %s135 = sphi 0, %s119
      %s141 = sphi 0, %s143
      %s144 = sphi 0, %s141
      %s145 = sphi 0, %s144
      %s161 = sphi 0, %s145
    $region4: #{tpu_custom_call.1} parent=1 // loop_header_branch
      %21 = sbr.rel (%p19) target = $region8
    $region5: #{tpu_custom_call.1} parent=1 // loop_body
      %s23 = ssub.s32 %s18, 1
      %s24 = ssub.s32 %s18, 2
      %s31 = sadd.s32 1, %s26
      %p32 = scmp.ge.s32.totalorder %s31, 1
      %s33 = scalar_select %p32, 0, %s31
      %s34 = sadd.s32 1, %s25
      %s35 = scalar_select %p32, %s34, %s25
      %p36 = scmp.ge.s32.totalorder %s35, 2
      %s37 = scalar_select %p36, 0, %s35
      %s38 = ssub.s32 %s25, %s37
      %p39 = scmp.eq.s32.totalorder %s38, 0
      %s41 = sadd.s32 %s40, 1
      %s42 = scalar_select %p39, %s40, %s41
      %p45 = pneg %p39
      %p46 = scmp.eq.s32.totalorder %s18, 1
      %p47 = por %p45, %p46
      %p48 = scmp.ne.s32.totalorder %s40, %s43
      %p49 = scmp.eq.s32.totalorder %s18, 0
      %p50 = por %p48, %p49
      %p51 = scmp.ne.s32.totalorder %s40, %s43
      %p52 = scmp.eq.s32.totalorder %s23, 1
      %p53 = por %p51, %p52
      %p54 = scmp.ne.s32.totalorder %s43, %s44
      %p55 = scmp.eq.s32.totalorder %s23, 0
      %p56 = por %p54, %p55
      %p57 = scmp.ne.s32.totalorder %s43, %s44
      %p58 = scmp.eq.s32.totalorder %s24, 1
      %p59 = por %p57, %p58
      %p61 = scmp.ne.s32.totalorder %s44, %s60
      %p62 = scmp.eq.s32.totalorder %s24, 0
      %p63 = por %p61, %p62
      %s65 = sadd.s32 %s64, 1
      %p68 = scmp.eq.s32.totalorder %s18, 1
      %p69 = scmp.ne.s32.totalorder %s64, %s66
      %p70 = scmp.eq.s32.totalorder %s18, 0
      %p71 = por %p69, %p70
      %p72 = scmp.ne.s32.totalorder %s64, %s66
      %p73 = scmp.eq.s32.totalorder %s23, 1
      %p74 = por %p72, %p73
      %p75 = scmp.ne.s32.totalorder %s66, %s67
      %p76 = scmp.eq.s32.totalorder %s23, 0
      %p77 = por %p75, %p76
      %p78 = scmp.ne.s32.totalorder %s66, %s67
      %p79 = scmp.eq.s32.totalorder %s24, 1
      %p80 = por %p78, %p79
      %p82 = scmp.ne.s32.totalorder %s67, %s81
      %p83 = scmp.eq.s32.totalorder %s24, 0
      %p84 = por %p82, %p83
      %s85 = ssub.s32 %s25, %s37
      %s86 = ssub.s32 %s26, %s33
      %s87 = sor.u32 %s85, %s86
      %p88 = scmp.eq.s32.totalorder %s87, 0
      %s90 = sadd.s32 %s89, 1
      %s91 = scalar_select %p88, %s89, %s90
      %p94 = pneg %p88
      %p95 = scmp.eq.s32.totalorder %s18, 1
      %p96 = por %p94, %p95
      %p97 = scmp.ne.s32.totalorder %s89, %s92
      %p98 = scmp.eq.s32.totalorder %s18, 0
      %p99 = por %p97, %p98
      %p100 = scmp.ne.s32.totalorder %s89, %s92
      %p101 = scmp.eq.s32.totalorder %s23, 1
      %p102 = por %p100, %p101
      %p103 = scmp.ne.s32.totalorder %s92, %s93
      %p104 = scmp.eq.s32.totalorder %s23, 0
      %p105 = por %p103, %p104
      %p106 = scmp.ne.s32.totalorder %s92, %s93
      %p107 = scmp.eq.s32.totalorder %s24, 1
      %p108 = por %p106, %p107
      %p110 = scmp.ne.s32.totalorder %s93, %s109
      %p111 = scmp.eq.s32.totalorder %s24, 0
      %p112 = por %p110, %p111
      %s113 = ssub.s32 %s25, %s37
      %p114 = scmp.eq.s32.totalorder %s113, 0
      %s116 = sadd.s32 %s115, 1
      %s117 = scalar_select %p114, %s115, %s116
      %p120 = pneg %p114
      %p121 = scmp.eq.s32.totalorder %s18, 1
      %p122 = por %p120, %p121
      %p123 = scmp.ne.s32.totalorder %s115, %s118
      %p124 = scmp.eq.s32.totalorder %s18, 0
      %p125 = por %p123, %p124
      %p126 = scmp.ne.s32.totalorder %s115, %s118
      %p127 = scmp.eq.s32.totalorder %s23, 1
      %p128 = por %p126, %p127
      %p129 = scmp.ne.s32.totalorder %s118, %s119
      %p130 = scmp.eq.s32.totalorder %s23, 0
      %p131 = por %p129, %p130
      %p132 = scmp.ne.s32.totalorder %s118, %s119
      %p133 = scmp.eq.s32.totalorder %s24, 1
      %p134 = por %p132, %p133
      %p136 = scmp.ne.s32.totalorder %s119, %s135
      %p137 = scmp.eq.s32.totalorder %s24, 0
      %p138 = por %p136, %p137
      %s139 = ssub.s32 %s25, %s37
      %p140 = scmp.eq.s32.totalorder %s139, 0
      %s142 = sadd.s32 %s141, 1
      %s143 = scalar_select %p140, %s141, %s142
      %p146 = pneg %p140
      %p147 = scmp.eq.s32.totalorder %s18, 1
      %p148 = por %p146, %p147
      %p149 = scmp.ne.s32.totalorder %s141, %s144
      %p150 = scmp.eq.s32.totalorder %s18, 0
      %p151 = por %p149, %p150
      %p152 = scmp.ne.s32.totalorder %s141, %s144
      %p153 = scmp.eq.s32.totalorder %s23, 1
      %p154 = por %p152, %p153
      %p155 = scmp.ne.s32.totalorder %s144, %s145
      %p156 = scmp.eq.s32.totalorder %s23, 0
      %p157 = por %p155, %p156
      %p158 = scmp.ne.s32.totalorder %s144, %s145
      %p159 = scmp.eq.s32.totalorder %s24, 1
      %p160 = por %p158, %p159
      %p162 = scmp.ne.s32.totalorder %s145, %s161
      %p163 = scmp.eq.s32.totalorder %s24, 0
      %p164 = por %p162, %p163
      %p165 = scmp.le.s32.totalorder 1, %s18
      %p166 = scmp.lt.s32.totalorder %s18, 3
      %p167 = pnand %p165, %p166
      %p168 = pneg %p167
      // Predicated region
      $region9: #{tpu_custom_call.1} parent=5 // pred_check
        _
      $region10: #{tpu_custom_call.1} parent=5 // pred_check_branch
        %170 = sbr.rel (%p167) target = $region12
      $region11: #{tpu_custom_call.1} parent=5 // pred_region
        %s171 = ssub.s32 %s18, 1
        // Predicated region
        $region13: #{tpu_custom_call.1} parent=11 // pred_check
          %p172 = pneg %p77
        $region14: #{tpu_custom_call.1} parent=11 // pred_check_branch
          %174 = sbr.rel (%p172) target = $region16
        $region15: #{tpu_custom_call.1} parent=11 // pred_region
          %s176 = ssub.s32 256, 256
          %177 = vsyncadd [#allocation8], %s176
          %s178 = sshll.u32 [#allocation7], 4
          %s179 = int_to_ptr.vmem [resolvable:$true] %s178
          %184 = dma.hbm_to_vmem [thread:$0]  %s1, 256, %s179, [#allocation8], 64, 64, 4
        $region16: #{tpu_custom_call.1} parent=11 // pred_fallthru
          _
      $region12: #{tpu_custom_call.1} parent=5 // pred_fallthru
        _
      %p185 = scmp.lt.s32.totalorder %s18, 2
      // Predicated region
      $region17: #{tpu_custom_call.1} parent=5 // pred_check
        %p186 = pneg %p185
      $region18: #{tpu_custom_call.1} parent=5 // pred_check_branch
        %188 = sbr.rel (%p186) target = $region20
      $region19: #{tpu_custom_call.1} parent=5 // pred_region
        // Predicated region
        $region21: #{tpu_custom_call.1} parent=19 // pred_check
          %p189 = pneg %p50
        $region22: #{tpu_custom_call.1} parent=19 // pred_check_branch
          %191 = sbr.rel (%p189) target = $region24
        $region23: #{tpu_custom_call.1} parent=19 // pred_region
          %s192 = sand.u32 %s40, 1
          %s193 = scalar_lea.sflag [#allocation5], %s192
          %s194 = sand.u32 %s40, 1
          %s195 = smul.addr %s194, 32
          %s196 = scalar_lea.vmem [#allocation4], %s195
          %s198 = ssub.s32 512, 512
          %199 = vsyncadd %s193, %s198
          %s200 = smul.addr %s25, 4
          %s201 = smul.addr %s200, 128
          %s202 = scalar_lea.hbm %s0, %s201
          %s203 = sshll.u32 %s196, 4
          %s204 = int_to_ptr.vmem [resolvable:$true] %s203
          %209 = dma.hbm_to_vmem [thread:$0]  %s202, 512, %s204, %s193, 128, 128, 8
        $region24: #{tpu_custom_call.1} parent=19 // pred_fallthru
          _
      $region20: #{tpu_custom_call.1} parent=5 // pred_fallthru
        _
      %p210 = scmp.le.s32.totalorder 1, %s18
      %p211 = scmp.lt.s32.totalorder %s18, 3
      %p212 = pnand %p210, %p211
      %p213 = pneg %p212
      // Predicated region
      $region25: #{tpu_custom_call.1} parent=5 // pred_check
        _
      $region26: #{tpu_custom_call.1} parent=5 // pred_check_branch
        %215 = sbr.rel (%p212) target = $region28
      $region27: #{tpu_custom_call.1} parent=5 // pred_region
        %s216 = ssub.s32 %s18, 1
        %s217 = sand.u32 %s43, 1
        %s218 = scalar_lea.sflag [#allocation5], %s217
        %s219 = sand.u32 %s43, 1
        %s220 = smul.addr %s219, 32
        %s221 = scalar_lea.vmem [#allocation4], %s220
        // Predicated region
        $region29: #{tpu_custom_call.1} parent=27 // pred_check
          %p222 = pneg %p56
        $region30: #{tpu_custom_call.1} parent=27 // pred_check_branch
          %224 = sbr.rel (%p222) target = $region32
        $region31: #{tpu_custom_call.1} parent=27 // pred_region
          %225 = dma.done %s218, 512
        $region32: #{tpu_custom_call.1} parent=27 // pred_fallthru
          _
        // Predicated region
        $region33: #{tpu_custom_call.1} parent=27 // pred_check
          %p226 = pneg %p77
        $region34: #{tpu_custom_call.1} parent=27 // pred_check_branch
          %228 = sbr.rel (%p226) target = $region36
        $region35: #{tpu_custom_call.1} parent=27 // pred_region
          %229 = dma.done [#allocation8], 256
        $region36: #{tpu_custom_call.1} parent=27 // pred_fallthru
          _
        %s230 = sand.u32 %s43, 1
        %s231 = scalar_lea.sflag [#allocation5], %s230
        %s232 = sand.u32 %s43, 1
        %s233 = smul.addr %s232, 32
        %s234 = scalar_lea.vmem [#allocation4], %s233
        %p235 = pneg %p56
        %p236 = pneg %p53
        %p237 = pneg %p77
        %p238 = pneg %p74
        %p239 = pneg %p105
        %p240 = pneg %p102
        %s241 = sand.u32 %s92, 1
        %s242 = scalar_lea.sflag [#allocation6], %s241
        %s243 = sand.u32 %s92, 1
        %s244 = smul.addr %s243, 16
        %s245 = scalar_lea.vmem [#allocation9], %s244
        %p246 = pneg %p131
        %p247 = pneg %p128
        %p248 = scmp.lt.s32.totalorder %s27, 1
        %s249 = scalar_select %p248, %s27, 1
        %s250 = smul.addr %s249, 4
        %s251 = smul.addr %s250, 8
        %s252 = scalar_lea.vmem %s3, %s251
        %p253 = pneg %p157
        %p254 = pneg %p154
        %p255 = scmp.lt.s32.totalorder %s27, 1
        %s256 = scalar_select %p255, %s27, 1
        %s257 = smul.addr %s256, 4
        %s258 = smul.addr %s257, 8
        %s259 = scalar_lea.vmem %s4, %s258
        %p260 = scmp.lt.s32.totalorder %s27, 1
        %s261 = scalar_select %p260, %s27, 1
        %s262 = smul.addr %s261, 4
        %s263 = smul.addr %s262, 8
        %s264 = scalar_lea.vmem %s3, %s263
        %p265 = scmp.lt.s32.totalorder %s27, 1
        %s266 = scalar_select %p265, %s27, 1
        %s267 = smul.addr %s266, 4
        %s268 = smul.addr %s267, 8
        %s269 = scalar_lea.vmem %s4, %s268
        %p271 = scmp.eq.s32.totalorder %s28, 0
        // Predicated region
        $region37: #{tpu_custom_call.1} parent=27 // pred_check
          %p272 = pneg %p271
        $region38: #{tpu_custom_call.1} parent=27 // pred_check_branch
          %274 = sbr.rel (%p272) target = $region40
        $region39: #{tpu_custom_call.1} parent=27 // pred_region
          %v275 = vld [vmem:[%s221] sm:$0xff]
          %v276 = vld [vmem:[%s221 + $0x8] sm:$0xff]
          %v277 = vld [vmem:[%s221 + $0x10] sm:$0xff]
          %v278 = vld [vmem:[%s221 + $0x18] sm:$0xff]
          %v279 = vpack.c.bf16 %v276, %v275
          %v280 = vpack.c.bf16 %v278, %v277
          %v283 = vunpack.c.l.b16 %v279
          %v284 = vunpack.c.h.b16 %v279
          %v285 = vunpack.c.l.b16 %v280
          %v286 = vunpack.c.h.b16 %v280
          %v287 = vpack.c.b16 %v283, %v283
          %v288 = vpack.c.b16 %v284, %v284
          %v289 = vpack.c.b16 %v285, %v285
          %v290 = vpack.c.b16 %v286, %v286
          %295 = vst [vmem:[#allocation2] sm:$0xf] %v287
          %296 = vst [vmem:[#allocation2 + $0x4] sm:$0xf] %v288
          %297 = vst [vmem:[#allocation2 + $0x8] sm:$0xf] %v289
          %298 = vst [vmem:[#allocation2 + $0xc] sm:$0xf] %v290
          %v299 = vld [vmem:[#allocation7] sm:$0xf]
          %v300 = vld [vmem:[#allocation7 + $0x4] sm:$0xf]
          %v301 = vld [vmem:[#allocation7 + $0x8] sm:$0xf]
          %v302 = vld [vmem:[#allocation7 + $0xc] sm:$0xf]
          %v307 = vunpack.c.l.b16 %v299
          %v308 = vunpack.c.l.b16 %v300
          %v309 = vunpack.c.l.b16 %v301
          %v310 = vunpack.c.l.b16 %v302
          %v311 = vpack.c.b16 %v308, %v307
          %v312 = vpack.c.b16 %v310, %v309
          %vm313 = vcmask 261120
          %v315 = vsel %vm313, %v311, 0
          %v318 = vsel %vm313, %v312, 0
          %320 = vmatprep.subr.bf16.mxu0 0
          %321 = vmatpush1.bf16.msra.mxu0 0
          %322 = vmatprep.subr.bf16.mxu0 0
          %323 = vmatpush1.bf16.msra.mxu0 0
          %324 = vmatprep.subr.bf16.mxu0 0
          %325 = vmatpush1.bf16.msra.mxu0 0
          %326 = vmatprep.subr.bf16.mxu0 0
          %327 = vmatpush1.bf16.msra.mxu0 0
          %328 = vmatprep.subr.bf16.mxu0 0
          %329 = vmatpush1.bf16.msra.mxu0 0
          %330 = vmatprep.subr.bf16.mxu0 0
          %331 = vmatpush1.bf16.msra.mxu0 0
          %332 = vmatprep.subr.bf16.mxu0 0
          %333 = vmatpush1.bf16.msra.mxu0 %v280
          %334 = vmatprep.subr.bf16.mxu0 0
          %335 = vmatpush1.bf16.msra.mxu0 %v279
          %336 = vmatprep.subr.bf16.mxu0 0
          %337 = vmatpush2.bf16.msra.mxu0 0
          %338 = vmatprep.subr.bf16.mxu0 0
          %339 = vmatpush2.bf16.msra.mxu0 0
          %340 = vmatprep.subr.bf16.mxu0 0
          %341 = vmatpush2.bf16.msra.mxu0 0
          %342 = vmatprep.subr.bf16.mxu0 0
          %343 = vmatpush2.bf16.msra.mxu0 0
          %344 = vmatprep.subr.bf16.mxu0 0
          %345 = vmatpush2.bf16.msra.mxu0 0
          %346 = vmatprep.subr.bf16.mxu0 0
          %347 = vmatpush2.bf16.msra.mxu0 0
          %348 = vmatprep.subr.bf16.mxu0 0
          %349 = vmatpush2.bf16.msra.mxu0 0
          %350 = vmatprep.subr.bf16.mxu0 0
          %351 = vmatpush2.bf16.msra.mxu0 0
          %352 = vmatprep.mubr.bf16.mxu0 0
          %353 = vmatmul.mubr.bf16.gmra.mxu0 %v315
          %v354 = vpop.f32.mrf.mxu0
          %v355 = vadd.f32 0.0, %v354
          %v356 = vpop.f32.mrf.mxu0
          %v357 = vpop.f32.mrf.mxu0
          %v358 = vadd.f32 0.0, %v357
          %v359 = vpop.f32.mrf.mxu0
          %360 = vmatprep.mubr.bf16.mxu0 0
          %361 = vmatmul.mubr.bf16.gmra.mxu0 %v318
          %v362 = vpop.f32.mrf.mxu0
          %v363 = vadd.f32 0.0, %v362
          %v364 = vpop.f32.mrf.mxu0
          %v365 = vpop.f32.mrf.mxu0
          %v366 = vadd.f32 0.0, %v365
          %v367 = vpop.f32.mrf.mxu0
          %368 = vdwg.mxu0
          %v369 = vpack.c.bf16 %v358, %v355
          %v370 = vpack.c.bf16 %v366, %v363
          %v373 = vunpack.c.l.b16 %v369
          %v374 = vunpack.c.h.b16 %v369
          %v375 = vunpack.c.l.b16 %v370
          %v376 = vunpack.c.h.b16 %v370
          %v377 = vpack.c.b16 %v373, %v373
          %v378 = vpack.c.b16 %v374, %v374
          %v379 = vpack.c.b16 %v375, %v375
          %v380 = vpack.c.b16 %v376, %v376
          %385 = vst [vmem:[#allocation3] sm:$0xf] %v377
          %386 = vst [vmem:[#allocation3 + $0x4] sm:$0xf] %v378
          %387 = vst [vmem:[#allocation3 + $0x8] sm:$0xf] %v379
          %388 = vst [vmem:[#allocation3 + $0xc] sm:$0xf] %v380
          %vm389 = vcmask 7168
          %390 = vst.msk [vmem:[%s264] sm:$0xff] %vm389, 0.0
          %391 = vst.msk [vmem:[%s264 + $0x8] sm:$0xff] %vm389, 0.0
          %392 = vst.msk [vmem:[%s264 + $0x10] sm:$0xff] %vm389, 0.0
          %393 = vst.msk [vmem:[%s264 + $0x18] sm:$0xff] %vm389, 0.0
          %394 = vst.msk [vmem:[%s269] sm:$0xff] %vm389, 0.0
          %395 = vst.msk [vmem:[%s269 + $0x8] sm:$0xff] %vm389, 0.0
          %396 = vst.msk [vmem:[%s269 + $0x10] sm:$0xff] %vm389, 0.0
          %397 = vst.msk [vmem:[%s269 + $0x18] sm:$0xff] %vm389, 0.0
        $region40: #{tpu_custom_call.1} parent=27 // pred_fallthru
          _
        %s398 = smul.u32 %s28, 128
        %s399 = sshra.s32 %s398, 7
        %s400 = sand.u32 %s398, 127
        %s401 = smul.addr %s399, 4
        %s402 = scalar_lea.vmem [#allocation2], %s401
        %v403 = vld [vmem:[%s402] sm:$0xf]
        %v404 = vld [vmem:[%s402 + $0x4] sm:$0xf]
        %v405 = vld [vmem:[%s402 + $0x8] sm:$0xf]
        %v406 = vld [vmem:[%s402 + $0xc] sm:$0xf]
        %v407 = vld [vmem:[#allocation2] sm:$0xf]
        %v408 = vld [vmem:[#allocation2 + $0x4] sm:$0xf]
        %v409 = vld [vmem:[#allocation2 + $0x8] sm:$0xf]
        %v410 = vld [vmem:[#allocation2 + $0xc] sm:$0xf]
        %v411 = vlaneseq
        %v412 = vand.u32 %v411, 127
        %vm413 = vcmp.lt.s32.totalorder %v412, 64
        %v414 = vsel %vm413, 0.0, -1e+30
        %v419 = vunpack.c.l.b16 %v403
        %v420 = vunpack.c.l.b16 %v404
        %v421 = vunpack.c.l.b16 %v405
        %v422 = vunpack.c.l.b16 %v406
        %v423 = vpack.c.b16 %v420, %v419
        %v424 = vpack.c.b16 %v422, %v421
        %427 = vxpose.xlu0.c.b16.start [1/8] %v423, 128
        %428 = vxpose.xlu0.c.b16.cont [2/8] %v424, 128
        %429 = vxpose.xlu0.c.b16.cont [3/8] 0, 128
        %430 = vxpose.xlu0.c.b16.cont [4/8] 0, 128
        %431 = vxpose.xlu0.c.b16.cont [5/8] 0, 128
        %432 = vxpose.xlu0.c.b16.cont [6/8] 0, 128
        %433 = vxpose.xlu0.c.b16.cont [7/8] 0, 128
        %434 = vxpose.xlu0.c.b16.end [8/8] 0, 128
        %v435 = vpop.trf.xlu0
        %v436 = vpop.trf.xlu0
        %v437 = vpop.trf.xlu0
        %v438 = vpop.trf.xlu0
        %v439 = vpop.trf.xlu0
        %v440 = vpop.trf.xlu0
        %v441 = vpop.trf.xlu0
        %v442 = vpop.trf.xlu0
        %v447 = vunpack.c.l.b16 %v407
        %v448 = vunpack.c.l.b16 %v408
        %v449 = vunpack.c.l.b16 %v409
        %v450 = vunpack.c.l.b16 %v410
        %v451 = vpack.c.b16 %v448, %v447
        %v452 = vpack.c.b16 %v450, %v449
        %vm455 = vcmask 261120
        %v457 = vsel %vm455, %v435, 0
        %v460 = vsel %vm455, %v436, 0
        %v463 = vsel %vm455, %v437, 0
        %v466 = vsel %vm455, %v438, 0
        %v469 = vsel %vm455, %v439, 0
        %v472 = vsel %vm455, %v440, 0
        %v475 = vsel %vm455, %v441, 0
        %v478 = vsel %vm455, %v442, 0
        %480 = vmatprep.subr.bf16.mxu0 0
        %481 = vmatpush1.bf16.msra.mxu0 0
        %482 = vmatprep.subr.bf16.mxu0 0
        %483 = vmatpush1.bf16.msra.mxu0 0
        %484 = vmatprep.subr.bf16.mxu0 0
        %485 = vmatpush1.bf16.msra.mxu0 0
        %486 = vmatprep.subr.bf16.mxu0 0
        %487 = vmatpush1.bf16.msra.mxu0 0
        %488 = vmatprep.subr.bf16.mxu0 0
        %489 = vmatpush1.bf16.msra.mxu0 0
        %490 = vmatprep.subr.bf16.mxu0 0
        %491 = vmatpush1.bf16.msra.mxu0 0
        %492 = vmatprep.subr.bf16.mxu0 0
        %493 = vmatpush1.bf16.msra.mxu0 %v452
        %494 = vmatprep.subr.bf16.mxu0 0
        %495 = vmatpush1.bf16.msra.mxu0 %v451
        %496 = vmatprep.subr.bf16.mxu0 0
        %497 = vmatpush2.bf16.msra.mxu0 0
        %498 = vmatprep.subr.bf16.mxu0 0
        %499 = vmatpush2.bf16.msra.mxu0 0
        %500 = vmatprep.subr.bf16.mxu0 0
        %501 = vmatpush2.bf16.msra.mxu0 0
        %502 = vmatprep.subr.bf16.mxu0 0
        %503 = vmatpush2.bf16.msra.mxu0 0
        %504 = vmatprep.subr.bf16.mxu0 0
        %505 = vmatpush2.bf16.msra.mxu0 0
        %506 = vmatprep.subr.bf16.mxu0 0
        %507 = vmatpush2.bf16.msra.mxu0 0
        %508 = vmatprep.subr.bf16.mxu0 0
        %509 = vmatpush2.bf16.msra.mxu0 0
        %510 = vmatprep.subr.bf16.mxu0 0
        %511 = vmatpush2.bf16.msra.mxu0 0
        %512 = vmatprep.mubr.bf16.mxu0 0
        %513 = vmatmul.mubr.bf16.gmra.mxu0 %v457
        %v514 = vpop.f32.mrf.mxu0
        %v515 = vadd.f32 %v414, %v514
        %v516 = vpop.f32.mrf.mxu0
        %v517 = vpop.f32.mrf.mxu0
        %v518 = vadd.f32 %v414, %v517
        %v519 = vpop.f32.mrf.mxu0
        %520 = vmatprep.mubr.bf16.mxu0 0
        %521 = vmatmul.mubr.bf16.gmra.mxu0 %v460
        %v522 = vpop.f32.mrf.mxu0
        %v523 = vadd.f32 %v414, %v522
        %v524 = vpop.f32.mrf.mxu0
        %v525 = vpop.f32.mrf.mxu0
        %v526 = vadd.f32 %v414, %v525
        %v527 = vpop.f32.mrf.mxu0
        %528 = vmatprep.mubr.bf16.mxu0 0
        %529 = vmatmul.mubr.bf16.gmra.mxu0 %v463
        %v530 = vpop.f32.mrf.mxu0
        %v531 = vadd.f32 %v414, %v530
        %v532 = vpop.f32.mrf.mxu0
        %v533 = vpop.f32.mrf.mxu0
        %v534 = vadd.f32 %v414, %v533
        %v535 = vpop.f32.mrf.mxu0
        %536 = vmatprep.mubr.bf16.mxu0 0
        %537 = vmatmul.mubr.bf16.gmra.mxu0 %v466
        %v538 = vpop.f32.mrf.mxu0
        %v539 = vadd.f32 %v414, %v538
        %v540 = vpop.f32.mrf.mxu0
        %v541 = vpop.f32.mrf.mxu0
        %v542 = vadd.f32 %v414, %v541
        %v543 = vpop.f32.mrf.mxu0
        %544 = vmatprep.mubr.bf16.mxu0 0
        %545 = vmatmul.mubr.bf16.gmra.mxu0 %v469
        %v546 = vpop.f32.mrf.mxu0
        %v547 = vadd.f32 %v414, %v546
        %v548 = vpop.f32.mrf.mxu0
        %v549 = vpop.f32.mrf.mxu0
        %v550 = vadd.f32 %v414, %v549
        %v551 = vpop.f32.mrf.mxu0
        %552 = vmatprep.mubr.bf16.mxu0 0
        %553 = vmatmul.mubr.bf16.gmra.mxu0 %v472
        %v554 = vpop.f32.mrf.mxu0
        %v555 = vadd.f32 %v414, %v554
        %v556 = vpop.f32.mrf.mxu0
        %v557 = vpop.f32.mrf.mxu0
        %v558 = vadd.f32 %v414, %v557
        %v559 = vpop.f32.mrf.mxu0
        %560 = vmatprep.mubr.bf16.mxu0 0
        %561 = vmatmul.mubr.bf16.gmra.mxu0 %v475
        %v562 = vpop.f32.mrf.mxu0
        %v563 = vadd.f32 %v414, %v562
        %v564 = vpop.f32.mrf.mxu0
        %v565 = vpop.f32.mrf.mxu0
        %v566 = vadd.f32 %v414, %v565
        %v567 = vpop.f32.mrf.mxu0
        %568 = vmatprep.mubr.bf16.mxu0 0
        %569 = vmatmul.mubr.bf16.gmra.mxu0 %v478
        %v570 = vpop.f32.mrf.mxu0
        %v571 = vadd.f32 %v414, %v570
        %v572 = vpop.f32.mrf.mxu0
        %v573 = vpop.f32.mrf.mxu0
        %v574 = vadd.f32 %v414, %v573
        %v575 = vpop.f32.mrf.mxu0
        %576 = vdwg.mxu0
        %577 = vmax.xlane.f32.xlu0 %v515
        %v578 = vpop.xlane.xlu0 %577
        %579 = vmax.xlane.f32.xlu0 %v518
        %v580 = vpop.xlane.xlu0 %579
        %581 = vmax.xlane.f32.xlu0 %v523
        %v582 = vpop.xlane.xlu0 %581
        %583 = vmax.xlane.f32.xlu0 %v526
        %v584 = vpop.xlane.xlu0 %583
        %585 = vmax.xlane.f32.xlu0 %v531
        %v586 = vpop.xlane.xlu0 %585
        %587 = vmax.xlane.f32.xlu0 %v534
        %v588 = vpop.xlane.xlu0 %587
        %589 = vmax.xlane.f32.xlu0 %v539
        %v590 = vpop.xlane.xlu0 %589
        %591 = vmax.xlane.f32.xlu0 %v542
        %v592 = vpop.xlane.xlu0 %591
        %593 = vmax.xlane.f32.xlu0 %v547
        %v594 = vpop.xlane.xlu0 %593
        %595 = vmax.xlane.f32.xlu0 %v550
        %v596 = vpop.xlane.xlu0 %595
        %597 = vmax.xlane.f32.xlu0 %v555
        %v598 = vpop.xlane.xlu0 %597
        %599 = vmax.xlane.f32.xlu0 %v558
        %v600 = vpop.xlane.xlu0 %599
        %601 = vmax.xlane.f32.xlu0 %v563
        %v602 = vpop.xlane.xlu0 %601
        %603 = vmax.xlane.f32.xlu0 %v566
        %v604 = vpop.xlane.xlu0 %603
        %605 = vmax.xlane.f32.xlu0 %v571
        %v606 = vpop.xlane.xlu0 %605
        %607 = vmax.xlane.f32.xlu0 %v574
        %v608 = vpop.xlane.xlu0 %607
        %v609 = vsub.f32 %v515, %v578
        %v610 = vsub.f32 %v518, %v580
        %v611 = vsub.f32 %v523, %v582
        %v612 = vsub.f32 %v526, %v584
        %v613 = vsub.f32 %v531, %v586
        %v614 = vsub.f32 %v534, %v588
        %v615 = vsub.f32 %v539, %v590
        %v616 = vsub.f32 %v542, %v592
        %v617 = vsub.f32 %v547, %v594
        %v618 = vsub.f32 %v550, %v596
        %v619 = vsub.f32 %v555, %v598
        %v620 = vsub.f32 %v558, %v600
        %v621 = vsub.f32 %v563, %v602
        %v622 = vsub.f32 %v566, %v604
        %v623 = vsub.f32 %v571, %v606
        %v624 = vsub.f32 %v574, %v608
        %v625 = vmul.f32 %v609, 1.442695
        %v626 = vpow.pop %v625
        %v627 = vmul.f32 %v610, 1.442695
        %v628 = vpow.pop %v627
        %v629 = vmul.f32 %v611, 1.442695
        %v630 = vpow.pop %v629
        %v631 = vmul.f32 %v612, 1.442695
        %v632 = vpow.pop %v631
        %v633 = vmul.f32 %v613, 1.442695
        %v634 = vpow.pop %v633
        %v635 = vmul.f32 %v614, 1.442695
        %v636 = vpow.pop %v635
        %v637 = vmul.f32 %v615, 1.442695
        %v638 = vpow.pop %v637
        %v639 = vmul.f32 %v616, 1.442695
        %v640 = vpow.pop %v639
        %v641 = vmul.f32 %v617, 1.442695
        %v642 = vpow.pop %v641
        %v643 = vmul.f32 %v618, 1.442695
        %v644 = vpow.pop %v643
        %v645 = vmul.f32 %v619, 1.442695
        %v646 = vpow.pop %v645
        %v647 = vmul.f32 %v620, 1.442695
        %v648 = vpow.pop %v647
        %v649 = vmul.f32 %v621, 1.442695
        %v650 = vpow.pop %v649
        %v651 = vmul.f32 %v622, 1.442695
        %v652 = vpow.pop %v651
        %v653 = vmul.f32 %v623, 1.442695
        %v654 = vpow.pop %v653
        %v655 = vmul.f32 %v624, 1.442695
        %v656 = vpow.pop %v655
        %657 = vadd.xlane.f32.xlu0 %v626
        %v658 = vpop.xlane.xlu0 %657
        %659 = vadd.xlane.f32.xlu0 %v628
        %v660 = vpop.xlane.xlu0 %659
        %661 = vadd.xlane.f32.xlu0 %v630
        %v662 = vpop.xlane.xlu0 %661
        %663 = vadd.xlane.f32.xlu0 %v632
        %v664 = vpop.xlane.xlu0 %663
        %665 = vadd.xlane.f32.xlu0 %v634
        %v666 = vpop.xlane.xlu0 %665
        %667 = vadd.xlane.f32.xlu0 %v636
        %v668 = vpop.xlane.xlu0 %667
        %669 = vadd.xlane.f32.xlu0 %v638
        %v670 = vpop.xlane.xlu0 %669
        %671 = vadd.xlane.f32.xlu0 %v640
        %v672 = vpop.xlane.xlu0 %671
        %673 = vadd.xlane.f32.xlu0 %v642
        %v674 = vpop.xlane.xlu0 %673
        %675 = vadd.xlane.f32.xlu0 %v644
        %v676 = vpop.xlane.xlu0 %675
        %677 = vadd.xlane.f32.xlu0 %v646
        %v678 = vpop.xlane.xlu0 %677
        %679 = vadd.xlane.f32.xlu0 %v648
        %v680 = vpop.xlane.xlu0 %679
        %681 = vadd.xlane.f32.xlu0 %v650
        %v682 = vpop.xlane.xlu0 %681
        %683 = vadd.xlane.f32.xlu0 %v652
        %v684 = vpop.xlane.xlu0 %683
        %685 = vadd.xlane.f32.xlu0 %v654
        %v686 = vpop.xlane.xlu0 %685
        %687 = vadd.xlane.f32.xlu0 %v656
        %v688 = vpop.xlane.xlu0 %687
        %v689 = vrcp.pop %v658
        %v690 = vrcp.pop %v660
        %v691 = vrcp.pop %v662
        %v692 = vrcp.pop %v664
        %v693 = vrcp.pop %v666
        %v694 = vrcp.pop %v668
        %v695 = vrcp.pop %v670
        %v696 = vrcp.pop %v672
        %v697 = vrcp.pop %v674
        %v698 = vrcp.pop %v676
        %v699 = vrcp.pop %v678
        %v700 = vrcp.pop %v680
        %v701 = vrcp.pop %v682
        %v702 = vrcp.pop %v684
        %v703 = vrcp.pop %v686
        %v704 = vrcp.pop %v688
        %v705 = vmul.f32 %v626, %v689
        %v706 = vmul.f32 %v628, %v690
        %v707 = vmul.f32 %v630, %v691
        %v708 = vmul.f32 %v632, %v692
        %v709 = vmul.f32 %v634, %v693
        %v710 = vmul.f32 %v636, %v694
        %v711 = vmul.f32 %v638, %v695
        %v712 = vmul.f32 %v640, %v696
        %v713 = vmul.f32 %v642, %v697
        %v714 = vmul.f32 %v644, %v698
        %v715 = vmul.f32 %v646, %v699
        %v716 = vmul.f32 %v648, %v700
        %v717 = vmul.f32 %v650, %v701
        %v718 = vmul.f32 %v652, %v702
        %v719 = vmul.f32 %v654, %v703
        %v720 = vmul.f32 %v656, %v704
        %v721 = vpack.c.bf16 %v706, %v705
        %v722 = vpack.c.bf16 %v708, %v707
        %v723 = vpack.c.bf16 %v710, %v709
        %v724 = vpack.c.bf16 %v712, %v711
        %v725 = vpack.c.bf16 %v714, %v713
        %v726 = vpack.c.bf16 %v716, %v715
        %v727 = vpack.c.bf16 %v718, %v717
        %v728 = vpack.c.bf16 %v720, %v719
        %v729 = vld [vmem:[#allocation3] sm:$0xf]
        %v730 = vld [vmem:[#allocation3 + $0x4] sm:$0xf]
        %v731 = vld [vmem:[#allocation3 + $0x8] sm:$0xf]
        %v732 = vld [vmem:[#allocation3 + $0xc] sm:$0xf]
        %v737 = vunpack.c.l.b16 %v729
        %v738 = vunpack.c.l.b16 %v730
        %v739 = vunpack.c.l.b16 %v731
        %v740 = vunpack.c.l.b16 %v732
        %v741 = vpack.c.b16 %v738, %v737
        %v742 = vpack.c.b16 %v740, %v739
        %745 = vmatprep.subr.bf16.mxu0 0
        %746 = vmatpush1.bf16.xpose.msra.mxu0 %v728
        %747 = vmatprep.subr.bf16.mxu0 0
        %748 = vmatpush1.bf16.xpose.msra.mxu0 %v727
        %749 = vmatprep.subr.bf16.mxu0 0
        %750 = vmatpush1.bf16.xpose.msra.mxu0 %v726
        %751 = vmatprep.subr.bf16.mxu0 0
        %752 = vmatpush1.bf16.xpose.msra.mxu0 %v725
        %753 = vmatprep.subr.bf16.mxu0 0
        %754 = vmatpush1.bf16.xpose.msra.mxu0 %v724
        %755 = vmatprep.subr.bf16.mxu0 0
        %756 = vmatpush1.bf16.xpose.msra.mxu0 %v723
        %757 = vmatprep.subr.bf16.mxu0 0
        %758 = vmatpush1.bf16.xpose.msra.mxu0 %v722
        %759 = vmatprep.subr.bf16.mxu0 0
        %760 = vmatpush1.bf16.xpose.msra.mxu0 %v721
        %761 = vmatprep.subr.bf16.mxu0 0
        %762 = vmatpush2.bf16.xpose.msra.mxu0 0
        %763 = vmatprep.subr.bf16.mxu0 0
        %764 = vmatpush2.bf16.xpose.msra.mxu0 0
        %765 = vmatprep.subr.bf16.mxu0 0
        %766 = vmatpush2.bf16.xpose.msra.mxu0 0
        %767 = vmatprep.subr.bf16.mxu0 0
        %768 = vmatpush2.bf16.xpose.msra.mxu0 0
        %769 = vmatprep.subr.bf16.mxu0 0
        %770 = vmatpush2.bf16.xpose.msra.mxu0 0
        %771 = vmatprep.subr.bf16.mxu0 0
        %772 = vmatpush2.bf16.xpose.msra.mxu0 0
        %773 = vmatprep.subr.bf16.mxu0 0
        %774 = vmatpush2.bf16.xpose.msra.mxu0 0
        %775 = vmatprep.subr.bf16.mxu0 0
        %776 = vmatpush2.bf16.xpose.msra.mxu0 0
        %777 = vmatprep.mubr.bf16.mxu0 0
        %778 = vmatmul.mubr.bf16.gmra.mxu0 %v741
        %v779 = vpop.f32.mrf.mxu0
        %v780 = vadd.f32 0.0, %v779
        %v781 = vpop.f32.mrf.mxu0
        %v782 = vpop.f32.mrf.mxu0
        %v783 = vadd.f32 0.0, %v782
        %v784 = vpop.f32.mrf.mxu0
        %785 = vmatprep.mubr.bf16.mxu0 0
        %786 = vmatmul.mubr.bf16.gmra.mxu0 %v742
        %v787 = vpop.f32.mrf.mxu0
        %v788 = vadd.f32 0.0, %v787
        %v789 = vpop.f32.mrf.mxu0
        %v790 = vpop.f32.mrf.mxu0
        %v791 = vadd.f32 0.0, %v790
        %v792 = vpop.f32.mrf.mxu0
        %793 = vdwg.mxu0
        %v794 = vmax.f32 %v780, 0.0
        %v795 = vmax.f32 %v783, 0.0
        %v796 = vmax.f32 %v788, 0.0
        %v797 = vmax.f32 %v791, 0.0
        %v798 = vstv %s398
        %v799 = vadd.s32 %v412, %v798
        %vm800 = vcmp.lt.s32.totalorder %v799, 64
        %v801 = vsel %vm800, 1, 0
        %v802 = vcvt.s32.f32 %v801
        %v803 = vmul.f32 %v794, %v802
        %v804 = vmul.f32 %v795, %v802
        %v805 = vmul.f32 %v796, %v802
        %v806 = vmul.f32 %v797, %v802
        %v807 = vpack.c.bf16 %v804, %v803
        %v808 = vpack.c.bf16 %v806, %v805
        %v811 = vunpack.c.l.b16 %v807
        %v812 = vunpack.c.h.b16 %v807
        %v813 = vunpack.c.l.b16 %v808
        %v814 = vunpack.c.h.b16 %v808
        %v815 = vpack.c.b16 %v811, %v811
        %v816 = vpack.c.b16 %v812, %v812
        %v817 = vpack.c.b16 %v813, %v813
        %v818 = vpack.c.b16 %v814, %v814
        %823 = vst [vmem:[%s245] sm:$0xf] %v815
        %824 = vst [vmem:[%s245 + $0x4] sm:$0xf] %v816
        %825 = vst [vmem:[%s245 + $0x8] sm:$0xf] %v817
        %826 = vst [vmem:[%s245 + $0xc] sm:$0xf] %v818
        %v827 = vld [vmem:[%s264] sm:$0xff]
        %v828 = vld [vmem:[%s264 + $0x8] sm:$0xff]
        %v829 = vld [vmem:[%s264 + $0x10] sm:$0xff]
        %v830 = vld [vmem:[%s264 + $0x18] sm:$0xff]
        %831 = vadd.xlane.f32.xlu0 %v803
        %v832 = vpop.xlane.xlu0 %831
        %833 = vadd.xlane.f32.xlu0 %v804
        %v834 = vpop.xlane.xlu0 %833
        %835 = vadd.xlane.f32.xlu0 %v805
        %v836 = vpop.xlane.xlu0 %835
        %837 = vadd.xlane.f32.xlu0 %v806
        %v838 = vpop.xlane.xlu0 %837
        %v839 = vadd.f32 %v827, %v832
        %v840 = vadd.f32 %v828, %v834
        %v841 = vadd.f32 %v829, %v836
        %v842 = vadd.f32 %v830, %v838
        %vm843 = vcmask 7168
        %844 = vst.msk [vmem:[%s264] sm:$0xff] %vm843, %v839
        %845 = vst.msk [vmem:[%s264 + $0x8] sm:$0xff] %vm843, %v840
        %846 = vst.msk [vmem:[%s264 + $0x10] sm:$0xff] %vm843, %v841
        %847 = vst.msk [vmem:[%s264 + $0x18] sm:$0xff] %vm843, %v842
        %v848 = vld [vmem:[%s269] sm:$0xff]
        %v849 = vld [vmem:[%s269 + $0x8] sm:$0xff]
        %v850 = vld [vmem:[%s269 + $0x10] sm:$0xff]
        %v851 = vld [vmem:[%s269 + $0x18] sm:$0xff]
        %v852 = vmul.f32 %v803, %v803
        %v853 = vmul.f32 %v804, %v804
        %v854 = vmul.f32 %v805, %v805
        %v855 = vmul.f32 %v806, %v806
        %856 = vadd.xlane.f32.xlu0 %v852
        %v857 = vpop.xlane.xlu0 %856
        %858 = vadd.xlane.f32.xlu0 %v853
        %v859 = vpop.xlane.xlu0 %858
        %860 = vadd.xlane.f32.xlu0 %v854
        %v861 = vpop.xlane.xlu0 %860
        %862 = vadd.xlane.f32.xlu0 %v855
        %v863 = vpop.xlane.xlu0 %862
        %v864 = vadd.f32 %v848, %v857
        %v865 = vadd.f32 %v849, %v859
        %v866 = vadd.f32 %v850, %v861
        %v867 = vadd.f32 %v851, %v863
        %868 = vst.msk [vmem:[%s269] sm:$0xff] %vm843, %v864
        %869 = vst.msk [vmem:[%s269 + $0x8] sm:$0xff] %vm843, %v865
        %870 = vst.msk [vmem:[%s269 + $0x10] sm:$0xff] %vm843, %v866
        %871 = vst.msk [vmem:[%s269 + $0x18] sm:$0xff] %vm843, %v867
        %s872 = sand.u32 %s92, 1
        %s873 = scalar_lea.sflag [#allocation6], %s872
        %s874 = sand.u32 %s92, 1
        %s875 = smul.addr %s874, 16
        %s876 = scalar_lea.vmem [#allocation9], %s875
        %p877 = scmp.lt.s32.totalorder %s27, 1
        %s878 = scalar_select %p877, %s27, 1
        %s879 = smul.addr %s878, 4
        %s880 = smul.addr %s879, 8
        %s881 = scalar_lea.vmem %s3, %s880
        %p882 = scmp.lt.s32.totalorder %s27, 1
        %s883 = scalar_select %p882, %s27, 1
        %s884 = smul.addr %s883, 4
        %s885 = smul.addr %s884, 8
        %s886 = scalar_lea.vmem %s4, %s885
        // Predicated region
        $region41: #{tpu_custom_call.1} parent=27 // pred_check
          %p887 = pneg %p102
        $region42: #{tpu_custom_call.1} parent=27 // pred_check_branch
          %889 = sbr.rel (%p887) target = $region44
        $region43: #{tpu_custom_call.1} parent=27 // pred_region
          %s891 = ssub.s32 256, 256
          %892 = vsyncadd %s873, %s891
          %s893 = smul.addr %s27, 4
          %s894 = sadd.s32 %s28, %s893
          %s895 = smul.addr %s894, 64
          %s896 = scalar_lea.hbm %s2, %s895
          %s897 = sshll.u32 %s876, 4
          %s898 = int_to_ptr.vmem [resolvable:$true] %s897
          %903 = dma.vmem_to_hbm [thread:$0]  %s898, 256, %s896, %s873, 64, 64, 4
        $region44: #{tpu_custom_call.1} parent=27 // pred_fallthru
          _
        // Predicated region
        $region45: #{tpu_custom_call.1} parent=27 // pred_check
          %p904 = pneg %p128
        $region46: #{tpu_custom_call.1} parent=27 // pred_check_branch
          %906 = sbr.rel (%p904) target = $region48
        $region47: #{tpu_custom_call.1} parent=27 // pred_region
          _
        $region48: #{tpu_custom_call.1} parent=27 // pred_fallthru
          _
        // Predicated region
        $region49: #{tpu_custom_call.1} parent=27 // pred_check
          %p907 = pneg %p154
        $region50: #{tpu_custom_call.1} parent=27 // pred_check_branch
          %909 = sbr.rel (%p907) target = $region52
        $region51: #{tpu_custom_call.1} parent=27 // pred_region
          _
        $region52: #{tpu_custom_call.1} parent=27 // pred_fallthru
          _
      $region28: #{tpu_custom_call.1} parent=5 // pred_fallthru
        _
      %p910 = scmp.le.s32.totalorder 2, %s18
      // Predicated region
      $region53: #{tpu_custom_call.1} parent=5 // pred_check
        %p911 = pneg %p910
      $region54: #{tpu_custom_call.1} parent=5 // pred_check_branch
        %913 = sbr.rel (%p911) target = $region56
      $region55: #{tpu_custom_call.1} parent=5 // pred_region
        %s914 = ssub.s32 %s18, 2
        // Predicated region
        $region57: #{tpu_custom_call.1} parent=55 // pred_check
          %p915 = pneg %p108
        $region58: #{tpu_custom_call.1} parent=55 // pred_check_branch
          %917 = sbr.rel (%p915) target = $region60
        $region59: #{tpu_custom_call.1} parent=55 // pred_region
          %s918 = sand.u32 %s93, 1
          %s919 = scalar_lea.sflag [#allocation6], %s918
          %s920 = sand.u32 %s93, 1
          %s921 = smul.addr %s920, 16
          %s922 = scalar_lea.vmem [#allocation9], %s921
          %923 = dma.done %s919, 256
        $region60: #{tpu_custom_call.1} parent=55 // pred_fallthru
          _
        // Predicated region
        $region61: #{tpu_custom_call.1} parent=55 // pred_check
          %p924 = pneg %p134
        $region62: #{tpu_custom_call.1} parent=55 // pred_check_branch
          %926 = sbr.rel (%p924) target = $region64
        $region63: #{tpu_custom_call.1} parent=55 // pred_region
          %p927 = scmp.lt.s32.totalorder %s29, 1
          %s928 = scalar_select %p927, %s29, 1
          %s929 = smul.addr %s928, 4
          %s930 = smul.addr %s929, 8
          %s931 = scalar_lea.vmem %s3, %s930
        $region64: #{tpu_custom_call.1} parent=55 // pred_fallthru
          _
        // Predicated region
        $region65: #{tpu_custom_call.1} parent=55 // pred_check
          %p932 = pneg %p160
        $region66: #{tpu_custom_call.1} parent=55 // pred_check_branch
          %934 = sbr.rel (%p932) target = $region68
        $region67: #{tpu_custom_call.1} parent=55 // pred_region
          %p935 = scmp.lt.s32.totalorder %s29, 1
          %s936 = scalar_select %p935, %s29, 1
          %s937 = smul.addr %s936, 4
          %s938 = smul.addr %s937, 8
          %s939 = scalar_lea.vmem %s4, %s938
        $region68: #{tpu_custom_call.1} parent=55 // pred_fallthru
          _
      $region56: #{tpu_custom_call.1} parent=5 // pred_fallthru
        _
    $region6: #{tpu_custom_call.1} parent=1 // loop_footer
      %s22 = sadd.s32 1, %s18
    $region7: #{tpu_custom_call.1} parent=1 // loop_footer_branch
      %17 = sbr.rel target = $region3
    $region8: #{tpu_custom_call.1} parent=1 // loop_exit
      _
    %940 = vsyncpa [#allocation5], 1
    %s941 = scalar_lea.sflag [#allocation5], 1
    %942 = vsyncpa %s941, 1
    %943 = vsyncpa [#allocation8], 1
    %944 = vsyncpa [#allocation6], 1
    %s945 = scalar_lea.sflag [#allocation6], 1
    %946 = vsyncpa %s945, 1

</llo_original>
